<compile_context>
chip_gen: v6e
topology: v6e:2x2x1
jax: 0.10.0
libtpu: 0.0.40
codegen_flags: <defaults>
</compile_context>

<pallas_src>
import numpy as np
import jax
import jax.numpy as jnp
from jax.experimental import pallas as pl
from jax.experimental.pallas import tpu as pltpu


def _round_up(x, m):
    return ((x + m - 1) // m) * m


def _pick_batch_tile(B, cap=64):
    """Largest multiple-of-8 divisor of B that is <= cap, else the full batch dim."""
    best = None
    for tb in range(8, min(B, cap) + 1, 8):
        if B % tb == 0:
            best = tb
    return best if best is not None else B


def _make_masked_sse_kernel(has_mask):
    """Per batch tile: sum of (x - y)^2 * [mask != 0] (full sum if no mask)."""

    def kernel(*refs):
        if has_mask:
            x_ref, y_ref, m_ref, o_ref, acc_ref = refs
        else:
            x_ref, y_ref, o_ref, acc_ref = refs
            m_ref = None

        n = pl.program_id(1)  # lane-tile (reduction) axis

        @pl.when(n == 0)
        def _():
            acc_ref[...] = jnp.zeros_like(acc_ref)

        d = x_ref[...].astype(jnp.float32) - y_ref[...].astype(jnp.float32)
        sq = d * d
        if has_mask:
            sq = sq * (m_ref[...] != 0).astype(jnp.float32)
        # Hot loop: pure element-wise adds (VPU); no per-step cross-lane reduce.
        acc_ref[...] += sq

        @pl.when(n == pl.num_programs(1) - 1)
        def _():
            # One cross-lane reduction per batch tile; result goes into lane
            # (0, 0) of this tile's private (8, 128) output block.
            s = jnp.sum(acc_ref[...])
            r = jax.lax.broadcasted_iota(jnp.int32, o_ref.shape, 0)
            c = jax.lax.broadcasted_iota(jnp.int32, o_ref.shape, 1)
            o_ref[...] = jnp.where((r == 0) & (c == 0), s, 0.0)

    return kernel


def masked_loss(input1, target0, masks=(), *, mode_image_masked=True,
                batch_tile=None, lane_tile=None):
    """MaskedLoss.forward with loss = MSE(mean) and mode_image_masked=True.

    input1, target0: (B, ...) arrays of the same shape (any float dtype).
    masks: tuple of integer label masks (targets[1:]); empty tuple == no mask.
    """
    assert mode_image_masked, "mode_image_masked=False (masked_select) not implemented"
    assert input1.shape == target0.shape

    B = input1.shape[0]
    N = int(np.prod(input1.shape[1:]))

    x = input1.reshape(B, N)
    y = target0.reshape(B, N)

    # getMask(): element-wise product of all mask targets (None if empty).
    mask = None
    for m in masks:
        mask = m if mask is None else mask * m
    has_mask = mask is not None
    if has_mask:
        assert mask.shape == input1.shape
        mask = mask.reshape(B, N)

    # --- tiling --------------------------------------------------------------
    TB = batch_tile if batch_tile is not None else _pick_batch_tile(B)
    assert B % TB == 0, "batch_tile must divide the batch size"
    if lane_tile is None:
        budget = 1 << 20                               # ~1 MiB per input buffer
        TN = max(128, (budget // (TB * 4)) // 128 * 128)
        TN = min(TN, _round_up(N, 128))
    else:
        TN = lane_tile
    assert TN % 128 == 0

    Npad = _round_up(N, TN)
    pad = Npad - N
    if pad:
        # Zero padding is exact: padded diffs are 0 and padded mask labels are 0.
        x = jnp.pad(x, ((0, 0), (0, pad)))
        y = jnp.pad(y, ((0, 0), (0, pad)))
        if has_mask:
            mask = jnp.pad(mask, ((0, 0), (0, pad)))

    nbt = B // TB
    nnt = Npad // TN
    grid = (nbt, nnt)

    tile_spec = pl.BlockSpec((TB, TN), lambda b, n: (b, n))
    in_specs = [tile_spec, tile_spec] + ([tile_spec] if has_mask else [])
    args = (x, y, mask) if has_mask else (x, y)

    partials = pl.pallas_call(
        _make_masked_sse_kernel(has_mask),
        out_shape=jax.ShapeDtypeStruct((8, 128 * nbt), jnp.float32),
        grid_spec=pltpu.PrefetchScalarGridSpec(
            num_scalar_prefetch=0,
            grid=grid,
            in_specs=in_specs,
            out_specs=pl.BlockSpec((8, 128), lambda b, n: (0, b)),
            scratch_shapes=[pltpu.VMEM((TB, TN), jnp.float32)],
        ),
        compiler_params=pltpu.CompilerParams(
            dimension_semantics=("parallel", "arbitrary"),
        ),
    )(*args)

    # Per-batch MSE uses mean over the full N-element sample (image-masked mode),
    # losses are summed over batch/labels and divided by B -> /(B*N) overall.
    return jnp.sum(partials) / (B * N)


if __name__ == "__main__":
    B, C, H, W = 2, 4, 16, 16
    key = jax.random.PRNGKey(0)
    k1, k2, k3, k4 = jax.random.split(key, 4)

    x = jax.random.normal(k1, (B, C, H, W), dtype=jnp.float32)
    y = jax.random.normal(k2, (B, C, H, W), dtype=jnp.float32)

    # Two integer label masks (targets[1:]); constant across the batch so the
    # reference's image-mode branch (which uses the full mask un-indexed) agrees
    # with per-batch masking.
    m1 = jnp.broadcast_to(jax.random.randint(k3, (1, C, H, W), 0, 4, dtype=jnp.int32),
                          (B, C, H, W))
    m2 = jnp.broadcast_to(jax.random.randint(k4, (1, C, H, W), 0, 3, dtype=jnp.int32),
                          (B, C, H, W))

    # ---- masked path (getMask = m1 * m2) ----
    out = jax.block_until_ready(masked_loss(x, y, (m1, m2)))

    # Literal NumPy re-implementation of MaskedLoss.forward (loss = MSE,
    # mode_image_masked=True), mirroring the PyTorch code.
    def mse(a, b):
        return np.mean((a - b) ** 2)

    xn, yn = np.asarray(x), np.asarray(y)
    comb = np.asarray(m1) * np.asarray(m2)
    ref = 0.0
    for b in range(B):
        for i in np.unique(comb):
            if i != 0:
                ref += mse(xn[b] * np.where(comb == i, 1, 0),
                           yn[b] * np.where(comb == i, 1, 0))
    ref /= B
    np.testing.assert_allclose(np.asarray(out), ref, rtol=1e-5, atol=1e-5)

    # ---- no-mask path (getMask returns None) ----
    out2 = jax.block_until_ready(masked_loss(x, y, ()))
    ref2 = sum(mse(xn[b], yn[b]) for b in range(B)) / B
    np.testing.assert_allclose(np.asarray(out2), ref2, rtol=1e-5, atol=1e-5)

    print("KERNEL_OK")
</pallas_src>

<mosaic_0001>
module attributes {stable_mosaic.version = 11 : i64} {
  func.func @kernel(%arg0: i32, %arg1: i32, %arg2: memref<2x1024xf32, #tpu.memory_space<vmem>>, %arg3: memref<2x1024xf32, #tpu.memory_space<vmem>>, %arg4: memref<2x1024xi32, #tpu.memory_space<vmem>>, %arg5: memref<8x128xf32, #tpu.memory_space<vmem>>, %arg6: memref<2x1024xf32, #tpu.memory_space<vmem>>) attributes {dimension_semantics = [#tpu.dimension_semantics<parallel>, #tpu.dimension_semantics<arbitrary>], iteration_bounds = array<i64: 1, 1>, scalar_prefetch = 0 : i64, scratch_operands = 1 : i64, tpu.core_type = #tpu.core_type<tc>, window_params = [{transform_indices = @transform_0, window_bounds = array<i64: 2, 1024>}, {transform_indices = @transform_1, window_bounds = array<i64: 2, 1024>}, {transform_indices = @transform_2, window_bounds = array<i64: 2, 1024>}, {transform_indices = @transform_3, window_bounds = array<i64: 8, 128>}]} {
    %c0_i32 = arith.constant 0 : i32
    %0 = arith.cmpi eq, %arg1, %c0_i32 : i32
    %1 = arith.extui %0 : i1 to i32
    %c0_i32_0 = arith.constant 0 : i32
    %2 = arith.cmpi ne, %1, %c0_i32_0 : i32
    scf.if %2 {
      %cst = arith.constant 0.000000e+00 : f32
      %19 = vector.broadcast %cst : f32 to vector<2x1024xf32>
      %c0_13 = arith.constant 0 : index
      %c0_14 = arith.constant 0 : index
      %20 = vector.load %arg6[%c0_13, %c0_14] : memref<2x1024xf32, #tpu.memory_space<vmem>>, vector<2x1024xf32>
      tpu.vector_store %arg6[%c0_13, %c0_14], %19 {strides = array<i32>} : memref<2x1024xf32, #tpu.memory_space<vmem>>, vector<2x1024xf32>,
    } else {
    }
    %c0 = arith.constant 0 : index
    %c0_1 = arith.constant 0 : index
    %3 = vector.load %arg2[%c0, %c0_1] : memref<2x1024xf32, #tpu.memory_space<vmem>>, vector<2x1024xf32>
    %c0_2 = arith.constant 0 : index
    %c0_3 = arith.constant 0 : index
    %4 = vector.load %arg3[%c0_2, %c0_3] : memref<2x1024xf32, #tpu.memory_space<vmem>>, vector<2x1024xf32>
    %5 = arith.subf %3, %4 : vector<2x1024xf32>
    %6 = arith.mulf %5, %5 : vector<2x1024xf32>
    %c0_4 = arith.constant 0 : index
    %c0_5 = arith.constant 0 : index
    %7 = vector.load %arg4[%c0_4, %c0_5] : memref<2x1024xi32, #tpu.memory_space<vmem>>, vector<2x1024xi32>
    %c0_i32_6 = arith.constant 0 : i32
    %8 = vector.broadcast %c0_i32_6 : i32 to vector<2x1024xi32>
    %9 = arith.cmpi ne, %7, %8 : vector<2x1024xi32>
    %10 = arith.extui %9 : vector<2x1024xi1> to vector<2x1024xi32>
    %11 = arith.sitofp %10 : vector<2x1024xi32> to vector<2x1024xf32>
    %12 = arith.mulf %6, %11 : vector<2x1024xf32>
    %c0_7 = arith.constant 0 : index
    %c0_8 = arith.constant 0 : index
    %13 = vector.load %arg6[%c0_7, %c0_8] : memref<2x1024xf32, #tpu.memory_space<vmem>>, vector<2x1024xf32>
    %14 = arith.addf %13, %12 : vector<2x1024xf32>
    %c0_9 = arith.constant 0 : index
    %c0_10 = arith.constant 0 : index
    %15 = vector.load %arg6[%c0_9, %c0_10] : memref<2x1024xf32, #tpu.memory_space<vmem>>, vector<2x1024xf32>
    tpu.vector_store %arg6[%c0_9, %c0_10], %14 {strides = array<i32>} : memref<2x1024xf32, #tpu.memory_space<vmem>>, vector<2x1024xf32>,
    %c0_i32_11 = arith.constant 0 : i32
    %16 = arith.cmpi eq, %arg1, %c0_i32_11 : i32
    %17 = arith.extui %16 : i1 to i32
    %c0_i32_12 = arith.constant 0 : i32
    %18 = arith.cmpi ne, %17, %c0_i32_12 : i32
    scf.if %18 {
      %c0_13 = arith.constant 0 : index
      %c0_14 = arith.constant 0 : index
      %19 = vector.load %arg6[%c0_13, %c0_14] : memref<2x1024xf32, #tpu.memory_space<vmem>>, vector<2x1024xf32>
      %20 = vector.shape_cast %19 : vector<2x1024xf32> to vector<1x2x1024xf32>
      %cst = arith.constant dense<0.000000e+00> : vector<1xf32>
      %21 = vector.multi_reduction <add>, %20, %cst [1, 2] : vector<1x2x1024xf32> to vector<1xf32>
      %22 = vector.shape_cast %21 : vector<1xf32> to vector<1x1x1xf32>
      %23 = vector.extract %22[0, 0, 0] : f32 from vector<1x1x1xf32>
      %24 = tpu.iota {dimensions = array<i32: 0>} : vector<8x128xi32>
      %25 = tpu.iota {dimensions = array<i32: 1>} : vector<8x128xi32>
      %c0_i32_15 = arith.constant 0 : i32
      %26 = vector.broadcast %c0_i32_15 : i32 to vector<8x128xi32>
      %27 = arith.cmpi eq, %24, %26 : vector<8x128xi32>
      %c0_i32_16 = arith.constant 0 : i32
      %28 = vector.broadcast %c0_i32_16 : i32 to vector<8x128xi32>
      %29 = arith.cmpi eq, %25, %28 : vector<8x128xi32>
      %30 = arith.andi %27, %29 : vector<8x128xi1>
      %cst_17 = arith.constant 0.000000e+00 : f32
      %31 = vector.broadcast %23 : f32 to vector<8x128xf32>
      %32 = vector.broadcast %cst_17 : f32 to vector<8x128xf32>
      %33 = arith.select %30, %31, %32 : vector<8x128xi1>, vector<8x128xf32>
      %c0_18 = arith.constant 0 : index
      %c0_19 = arith.constant 0 : index
      %34 = vector.load %arg5[%c0_18, %c0_19] : memref<8x128xf32, #tpu.memory_space<vmem>>, vector<8x128xf32>
      tpu.vector_store %arg5[%c0_18, %c0_19], %33 {strides = array<i32>} : memref<8x128xf32, #tpu.memory_space<vmem>>, vector<8x128xf32>,
    } else {
    }
    return
  }
  func.func @transform_0(%arg0: i32, %arg1: i32) -> (i32, i32) {
    %c0_i32 = arith.constant 0 : i32
    return %arg0, %arg1 : i32, i32
  }
  func.func @transform_1(%arg0: i32, %arg1: i32) -> (i32, i32) {
    %c0_i32 = arith.constant 0 : i32
    return %arg0, %arg1 : i32, i32
  }
  func.func @transform_2(%arg0: i32, %arg1: i32) -> (i32, i32) {
    %c0_i32 = arith.constant 0 : i32
    return %arg0, %arg1 : i32, i32
  }
  func.func @transform_3(%arg0: i32, %arg1: i32) -> (i32, i32) {
    %c0_i32 = arith.constant 0 : i32
    %c0_i32_0 = arith.constant 0 : i32
    return %c0_i32, %arg0 : i32, i32
  }
}

</mosaic_0001>

<llo_original>
// kernel: tpu_custom_call.1
$region0: #{tpu_custom_call.1}
  #allocation0 [shape = 'u32[]', space=smem, size = 0x4, offset = 0x4, fixed_abs, tag = 'smem constant byte address 0x4 - core index']
  #allocation1 [shape = 'u32[144,128]{1,0:T(1,128)}', space=vmem, size = 0x12000, scoped, tag = 'internal scratch']
  #allocation2 [shape = 'f32[2,1024]{1,0:T(2,128)}', space=vmem, size = 0x2000, scoped, tag = 'scratch operand']
  %s0 = inlined_call_operand.hbm [shape: f32[2,1024], index: 0, kind: input, shape index: {}]
  %s1 = inlined_call_operand.hbm [shape: f32[2,1024], index: 1, kind: input, shape index: {}]
  %s2 = inlined_call_operand.hbm [shape: s32[2,1024], index: 2, kind: input, shape index: {}]
  %s3 = inlined_call_operand.hbm [shape: f32[8,128], index: 3, kind: output, shape index: {}]
  %s4 = sld [smem:[#allocation0]]
  $region42: #{tpu_custom_call.1} parent=0
    _
  %s6 = ssub.s32 1, %s4
  %s7 = scalar_select 0, %s6, %s4
  $region1: #{tpu_custom_call.1} parent=0
    #allocation3 [shape = 'u8[8192]{0}', space=vmem, size = 0x2000, scoped, tag = 'input window, operand 0, single buffered']
    #allocation4 [shape = 's32[1]{0}', space=sflag, size = 0x4, scoped, tag = 'scoped memory for tpu_custom_call.1']
    #allocation5 [shape = 's32[1]{0}', space=sflag, size = 0x4, scoped, tag = 'scoped memory for tpu_custom_call.1']
    #allocation6 [shape = 'u8[8192]{0}', space=vmem, size = 0x2000, scoped, tag = 'input window, operand 1, single buffered']
    #allocation7 [shape = 's32[1]{0}', space=sflag, size = 0x4, scoped, tag = 'scoped memory for tpu_custom_call.1']
    #allocation8 [shape = 'u8[8192]{0}', space=vmem, size = 0x2000, scoped, tag = 'input window, operand 2, single buffered']
    #allocation9 [shape = 'u8[4096]{0}', space=vmem, size = 0x1000, scoped, tag = 'output window, operand 0, single buffered']
    %8 = vsyncpa [#allocation4], 0
    %9 = vsyncpa [#allocation7], 0
    %10 = vsyncpa [#allocation5], 0
    // Predicated region
    $region2: #{tpu_custom_call.1} parent=1 // pred_check
      _
    $region3: #{tpu_custom_call.1} parent=1 // pred_check_branch
      %12 = sbr.rel (0) target = $region5
    $region4: #{tpu_custom_call.1} parent=1 // pred_region
      %s14 = ssub.s32 256, 256
      %15 = vsyncadd [#allocation4], %s14
      %s17 = sshll.u32 [#allocation3], 4
      %s18 = int_to_ptr.vmem [resolvable:$true] %s17
      %20 = dma.hbm_to_vmem [thread:$0]  %s0, 256, %s18, [#allocation4]
    $region5: #{tpu_custom_call.1} parent=1 // pred_fallthru
      _
    // Predicated region
    $region6: #{tpu_custom_call.1} parent=1 // pred_check
      _
    $region7: #{tpu_custom_call.1} parent=1 // pred_check_branch
      %22 = sbr.rel (0) target = $region9
    $region8: #{tpu_custom_call.1} parent=1 // pred_region
      %s24 = ssub.s32 256, 256
      %25 = vsyncadd [#allocation7], %s24
      %s27 = sshll.u32 [#allocation6], 4
      %s28 = int_to_ptr.vmem [resolvable:$true] %s27
      %30 = dma.hbm_to_vmem [thread:$0]  %s1, 256, %s28, [#allocation7]
    $region9: #{tpu_custom_call.1} parent=1 // pred_fallthru
      _
    // Predicated region
    $region10: #{tpu_custom_call.1} parent=1 // pred_check
      _
    $region11: #{tpu_custom_call.1} parent=1 // pred_check_branch
      %32 = sbr.rel (0) target = $region13
    $region12: #{tpu_custom_call.1} parent=1 // pred_region
      %s34 = ssub.s32 256, 256
      %35 = vsyncadd [#allocation7], %s34
      %s37 = sshll.u32 [#allocation8], 4
      %s38 = int_to_ptr.vmem [resolvable:$true] %s37
      %40 = dma.hbm_to_vmem [thread:$0]  %s2, 256, %s38, [#allocation7]
    $region13: #{tpu_custom_call.1} parent=1 // pred_fallthru
      _
    // Predicated region
    $region14: #{tpu_custom_call.1} parent=1 // pred_check
      _
    $region15: #{tpu_custom_call.1} parent=1 // pred_check_branch
      %42 = sbr.rel (0) target = $region17
    $region16: #{tpu_custom_call.1} parent=1 // pred_region
      %43 = dma.done [#allocation4], 256
    $region17: #{tpu_custom_call.1} parent=1 // pred_fallthru
      _
    // Predicated region
    $region18: #{tpu_custom_call.1} parent=1 // pred_check
      _
    $region19: #{tpu_custom_call.1} parent=1 // pred_check_branch
      %45 = sbr.rel (0) target = $region21
    $region20: #{tpu_custom_call.1} parent=1 // pred_region
      %46 = dma.done [#allocation7], 256
    $region21: #{tpu_custom_call.1} parent=1 // pred_fallthru
      _
    // Predicated region
    $region22: #{tpu_custom_call.1} parent=1 // pred_check
      _
    $region23: #{tpu_custom_call.1} parent=1 // pred_check_branch
      %48 = sbr.rel (0) target = $region25
    $region24: #{tpu_custom_call.1} parent=1 // pred_region
      %49 = dma.done [#allocation7], 256
    $region25: #{tpu_custom_call.1} parent=1 // pred_fallthru
      _
    %p50 = scmp.eq.s32.totalorder 0, 0
    // Predicated region
    $region26: #{tpu_custom_call.1} parent=1 // pred_check
      %p51 = pneg %p50
    $region27: #{tpu_custom_call.1} parent=1 // pred_check_branch
      %53 = sbr.rel (%p51) target = $region29
    $region28: #{tpu_custom_call.1} parent=1 // pred_region
      %54 = vst [vmem:[#allocation2] sm:$0xff] 0.0
      %55 = vst [vmem:[#allocation2 + $0x8] sm:$0xff] 0.0
    $region29: #{tpu_custom_call.1} parent=1 // pred_fallthru
      _
    %v56 = vld [vmem:[#allocation3] sm:$0xff]
    %v57 = vld [vmem:[#allocation3 + $0x8] sm:$0xff]
    %v58 = vld [vmem:[#allocation6] sm:$0xff]
    %v59 = vld [vmem:[#allocation6 + $0x8] sm:$0xff]
    %v60 = vsub.f32 %v56, %v58
    %v61 = vsub.f32 %v57, %v59
    %v62 = vmul.f32 %v60, %v60
    %v63 = vmul.f32 %v61, %v61
    %v64 = vld [vmem:[#allocation8] sm:$0xff]
    %v65 = vld [vmem:[#allocation8 + $0x8] sm:$0xff]
    %vm66 = vcmp.ne.s32.totalorder %v64, 0
    %vm67 = vcmp.ne.s32.totalorder %v65, 0
    %v68 = vsel %vm66, 1, 0
    %v69 = vsel %vm67, 1, 0
    %v70 = vcvt.s32.f32 %v68
    %v71 = vcvt.s32.f32 %v69
    %v72 = vmul.f32 %v62, %v70
    %v73 = vmul.f32 %v63, %v71
    %v74 = vld [vmem:[#allocation2] sm:$0xff]
    %v75 = vld [vmem:[#allocation2 + $0x8] sm:$0xff]
    %v76 = vadd.f32 %v74, %v72
    %v77 = vadd.f32 %v75, %v73
    %78 = vst [vmem:[#allocation2] sm:$0xff] %v76
    %79 = vst [vmem:[#allocation2 + $0x8] sm:$0xff] %v77
    // Predicated region
    $region30: #{tpu_custom_call.1} parent=1 // pred_check
      %p80 = pneg %p50
    $region31: #{tpu_custom_call.1} parent=1 // pred_check_branch
      %82 = sbr.rel (%p80) target = $region33
    $region32: #{tpu_custom_call.1} parent=1 // pred_region
      %v83 = vld [vmem:[#allocation2] sm:$0xff]
      %v84 = vld [vmem:[#allocation2 + $0x8] sm:$0xff]
      %v87 = vcombine.high %v83, %v83
      %v89 = vunpack.c.l.s4 1983009808
      %v90 = vunpack.c.0.s8 %v89
      %v91 = vlaneseq
      %v92 = vshrl.u32 %v91, 7
      %v93 = vsub.s32 %v90, %v92
      %v94 = vrot.slane %v83, %v93
      %v96 = vunpack.c.l.s4 1983009808
      %v97 = vunpack.c.0.s8 %v96
      %v98 = vlaneseq
      %v99 = vshrl.u32 %v98, 7
      %v100 = vsub.s32 %v97, %v99
      %v101 = vrot.slane %v87, %v100
      %v102 = vcombine.high %v94, %v94
      %v103 = vcombine.high %v101, %v101
      %v104 = vcombine.high %v84, %v84
      %v106 = vunpack.c.l.s4 1983009808
      %v107 = vunpack.c.0.s8 %v106
      %v108 = vlaneseq
      %v109 = vshrl.u32 %v108, 7
      %v110 = vsub.s32 %v107, %v109
      %v111 = vrot.slane %v84, %v110
      %v113 = vunpack.c.l.s4 1983009808
      %v114 = vunpack.c.0.s8 %v113
      %v115 = vlaneseq
      %v116 = vshrl.u32 %v115, 7
      %v117 = vsub.s32 %v114, %v116
      %v118 = vrot.slane %v104, %v117
      %v119 = vcombine.high %v111, %v111
      %v120 = vcombine.high %v118, %v118
      %vm129 = vcmask 1041408
      %v130 = vsel %vm129, %v94, 0.0
      %v131 = vsel %vm129, %v102, 0.0
      %v132 = vadd.f32 %v130, %v131
      %v133 = vsel %vm129, %v101, 0.0
      %v134 = vadd.f32 %v132, %v133
      %v135 = vsel %vm129, %v103, 0.0
      %v136 = vadd.f32 %v134, %v135
      %v137 = vsel %vm129, %v111, 0.0
      %v138 = vadd.f32 %v136, %v137
      %v139 = vsel %vm129, %v119, 0.0
      %v140 = vadd.f32 %v138, %v139
      %v141 = vsel %vm129, %v118, 0.0
      %v142 = vadd.f32 %v140, %v141
      %v143 = vsel %vm129, %v120, 0.0
      %v144 = vadd.f32 %v142, %v143
      %145 = vadd.xlane.f32.xlu0 %v144
      %v146 = vpop.xlane.xlu0 %145
      %v147 = vrot.slane %v146, 4
      %v148 = vadd.f32 %v146, %v147
      %v149 = vrot.slane %v148, 2
      %v150 = vadd.f32 %v148, %v149
      %v151 = vrot.slane %v150, 1
      %v152 = vadd.f32 %v150, %v151
      %s153 = vtos %v152
      %v154 = vlaneseq
      %v155 = vshrl.u32 %v154, 7
      %v156 = vlaneseq
      %v157 = vand.u32 %v156, 127
      %vm158 = vcmp.eq.s32.totalorder %v155, 0
      %vm159 = vcmp.eq.s32.totalorder %v157, 0
      %vm160 = vmand %vm158, %vm159
      %v161 = vstv %s153
      %v162 = vsel %vm160, %v161, 0.0
      %163 = vst [vmem:[#allocation9] sm:$0xff] %v162
    $region33: #{tpu_custom_call.1} parent=1 // pred_fallthru
      _
    // Predicated region
    $region34: #{tpu_custom_call.1} parent=1 // pred_check
      _
    $region35: #{tpu_custom_call.1} parent=1 // pred_check_branch
      %165 = sbr.rel (0) target = $region37
    $region36: #{tpu_custom_call.1} parent=1 // pred_region
      %s167 = ssub.s32 128, 128
      %168 = vsyncadd [#allocation5], %s167
      %s170 = sshll.u32 [#allocation9], 4
      %s171 = int_to_ptr.vmem [resolvable:$true] %s170
      %173 = dma.vmem_to_hbm [thread:$0]  %s171, 128, %s3, [#allocation5]
    $region37: #{tpu_custom_call.1} parent=1 // pred_fallthru
      _
    // Predicated region
    $region38: #{tpu_custom_call.1} parent=1 // pred_check
      _
    $region39: #{tpu_custom_call.1} parent=1 // pred_check_branch
      %175 = sbr.rel (0) target = $region41
    $region40: #{tpu_custom_call.1} parent=1 // pred_region
      %176 = dma.done [#allocation5], 128
    $region41: #{tpu_custom_call.1} parent=1 // pred_fallthru
      _
    %177 = vsyncpa [#allocation4], 1
    %178 = vsyncpa [#allocation7], 1
    %179 = vsyncpa [#allocation5], 1

</llo_original>
